<compile_context>
chip_gen: v7x
topology: tpu7x:2x2x1
jax: 0.10.0
libtpu: 0.0.40
codegen_flags: <defaults>
</compile_context>

<pallas_src>
import functools

import jax
import jax.numpy as jnp
import numpy as np
from jax.experimental import pallas as pl
from jax.experimental.pallas import tpu as pltpu

BN_EPS = 1e-5
_VMEM_LIMIT = 32 * 1024 * 1024


def _masked_shift(z, shift, axis, pos, size):
    """out[.., i, ..] = z[.., i + shift, ..] along `axis`, zeroed where pos+shift is outside [0, size).

    `pos` is the logical coordinate of every element (row-within-image for the height axis,
    lane index for the width axis), so the zero fill implements the conv / avg-pool zero
    padding, including at image boundaries inside the stacked (N*H, W*C) layout.
    """
    rolled = pltpu.roll(z, shift=(-shift) % z.shape[axis], axis=axis)
    keep = (pos + shift >= 0) & (pos + shift < size)
    return jnp.where(keep, rolled, 0.0)


def _fused_kernel(chan, h_img, inv_cnt, x_ref, band_ref, proj_ref, hpos_ref, ab_ref, out_ref):
    """conv3x3 -> BatchNorm(batch stats) -> tanh -> avgpool3x3 -> alpha*x + beta*pool, fused."""
    x = x_ref[...]                                            # (N*H, W*C) lane-dense stack
    nh, wc = x.shape
    hpos = hpos_ref[...]                                      # (N*H, W*C) int32 row-in-image
    lidx = jax.lax.broadcasted_iota(jnp.int32, (nh, wc), 1)   # lane index, computed once

    # --- Conv2d(C, C, 3, stride=1, pad=1, bias=False): one fat banded matmul. -------------
    # The band matrix folds the three kw taps + the width zero padding; the kh taps become
    # masked sublane shifts (masks respect per-image height padding).
    z = jnp.dot(x, band_ref[...], preferred_element_type=jnp.float32)    # (N*H, 3*W*C)
    y = (z[:, wc:2 * wc]
         + _masked_shift(z[:, :wc], -1, 0, hpos, h_img)       # kh = 0 uses row h-1
         + _masked_shift(z[:, 2 * wc:], 1, 0, hpos, h_img))   # kh = 2 uses row h+1

    # --- BatchNorm2d(affine=False), training-mode batch statistics, finalized in-kernel. --
    # proj[l, l2] = (channel(l) == channel(l2)): sums over w and broadcasts back over w so
    # per-channel stats stay lane-dense.  Exact two-step: mean, then E[(y - mean)^2].
    yp = jnp.dot(y, proj_ref[...], preferred_element_type=jnp.float32)
    mean = jnp.sum(yp, axis=0, keepdims=True) * inv_cnt                  # (1, W*C)
    d = y - mean
    dp = jnp.dot(d * d, proj_ref[...], preferred_element_type=jnp.float32)
    var = jnp.sum(dp, axis=0, keepdims=True) * inv_cnt                   # biased batch var
    t = jnp.tanh(d * jax.lax.rsqrt(var + BN_EPS))

    # --- AvgPool2d(3, stride=1, pad=1, count_include_pad=True): separable shifted sums. ---
    row = (t
           + _masked_shift(t, chan, 1, lidx, wc)              # width +1 (lane shift by C)
           + _masked_shift(t, -chan, 1, lidx, wc))            # width -1
    pool = (row
            + _masked_shift(row, 1, 0, hpos, h_img)           # height +1
            + _masked_shift(row, -1, 0, hpos, h_img)) * (1.0 / 9.0)

    # --- identity shortcut (stride=1) + fixed alpha/beta scaling (SMEM scalars). ----------
    out_ref[...] = (ab_ref[0] * x + ab_ref[1] * pool).astype(out_ref.dtype)


def _prepare_constants(w_oihw, n, h, w_dim):
    """Host-side (NumPy) preprocessing of the conv weight into MXU-friendly matrices."""
    w_np = np.asarray(w_oihw, dtype=np.float32)               # (Cout, Cin, 3, 3)
    c_out, c_in, kh, kw = w_np.shape
    assert kh == 3 and kw == 3 and c_out == c_in
    wc = w_dim * c_in

    # band[kh][w*Cin+ci, w2*Cout+co] = weight[co, ci, kh, w-w2+1] if |w-w2| <= 1 else 0,
    # so y[row, :] = sum_kh x[row + kh - 1, :] @ band[kh]  (width padding is in the band).
    wt = np.transpose(w_np, (2, 3, 1, 0))                     # (kh, kw, Cin, Cout)
    widx = np.arange(w_dim)
    dw = widx[:, None] - widx[None, :]                        # (W, W): w - w2
    g = wt[:, np.clip(dw + 1, 0, 2)]                          # (kh, W, W, Cin, Cout)
    g = np.where((np.abs(dw) <= 1)[None, :, :, None, None], g, 0.0)
    band = np.transpose(g, (0, 1, 3, 2, 4)).reshape(3, wc, wc)
    band_cat = np.concatenate([band[0], band[1], band[2]], axis=1)       # (W*C, 3*W*C)

    # Per-channel reduce + broadcast projector: proj[l, l2] = 1 iff l % C == l2 % C.
    lanes = np.arange(wc)
    proj = (lanes[:, None] % c_in == lanes[None, :] % c_in).astype(np.float32)

    # Row-within-image index for every row of the stacked (N*H, W*C) layout (height masks).
    hpos = np.ascontiguousarray(
        np.broadcast_to(np.tile(np.arange(h, dtype=np.int32), n)[:, None], (n * h, wc)))

    return jnp.asarray(band_cat), jnp.asarray(proj), jnp.asarray(hpos)


@jax.jit
def _forward(x_nchw, band, proj, hpos, ab):
    n, c, h, w = x_nchw.shape
    wc, nh = w * c, n * h
    # NHWC, W folded into the lane axis: last dim = W*C (=128 in the test) -> lane-dense
    # elementwise path and full-lane stores.  Reshape of contiguous NHWC is free.
    x2d = jnp.transpose(x_nchw, (0, 2, 3, 1)).astype(jnp.float32).reshape(nh, wc)
    kernel = functools.partial(_fused_kernel, c, h, 1.0 / float(n * h * w))
    out2d = pl.pallas_call(
        kernel,
        out_shape=jax.ShapeDtypeStruct((nh, wc), jnp.float32),
        grid=(1,),                                    # fully fused: one launch, one step
        in_specs=[
            pl.BlockSpec((nh, wc), lambda i: (0, 0)),           # x (full batch)
            pl.BlockSpec((wc, 3 * wc), lambda i: (0, 0)),       # banded conv weights
            pl.BlockSpec((wc, wc), lambda i: (0, 0)),           # per-channel projector
            pl.BlockSpec((nh, wc), lambda i: (0, 0)),           # row-within-image index
            pl.BlockSpec(memory_space=pltpu.MemorySpace.SMEM),  # alpha/beta scalars
        ],
        out_specs=pl.BlockSpec((nh, wc), lambda i: (0, 0)),
        compiler_params=pltpu.CompilerParams(
            dimension_semantics=("arbitrary",),
            vmem_limit_bytes=_VMEM_LIMIT),
    )(x2d, band, proj, hpos, ab)
    return jnp.transpose(out2d.reshape(n, h, w, c), (0, 3, 1, 2))


def residual_block(x_nchw, w_oihw, alpha, beta, stride=1, skip_option="identity"):
    """Matches ResidualBlock(n_filters, alpha, beta, stride=1, 'identity').forward."""
    # TODO(synk): stride > 1 and skip_option='conv' variants are not implemented.
    assert stride == 1 and skip_option == "identity"
    n, c, h, w = x_nchw.shape
    band, proj, hpos = _prepare_constants(w_oihw, n, h, w)     # host/NumPy preprocessing
    ab = jnp.asarray([alpha, beta], dtype=jnp.float32)         # SMEM scalars
    return _forward(x_nchw, band, proj, hpos, ab)


def _reference(x, w, alpha, beta):
    """Pure-JAX reference (NCHW), mirrors the PyTorch forward."""
    conv = jax.lax.conv_general_dilated(
        x, w, window_strides=(1, 1), padding=((1, 1), (1, 1)),
        dimension_numbers=("NCHW", "OIHW", "NCHW"))
    mean = conv.mean(axis=(0, 2, 3), keepdims=True)
    var = ((conv - mean) ** 2).mean(axis=(0, 2, 3), keepdims=True)
    t = jnp.tanh((conv - mean) / jnp.sqrt(var + BN_EPS))
    tp = jnp.pad(t, ((0, 0), (0, 0), (1, 1), (1, 1)))
    pool = jax.lax.reduce_window(tp, 0.0, jax.lax.add,
                                 (1, 1, 3, 3), (1, 1, 1, 1), "VALID") / 9.0
    return alpha * x + beta * pool


if __name__ == "__main__":
    key = jax.random.PRNGKey(0)
    kx, kw = jax.random.split(key)

    N, C, H, W = 2, 8, 16, 16          # batch=2, n_filters=8, 16x16 spatial  (W*C = 128 lanes)
    alpha, beta = 0.9, 0.4             # fixed (non-trainable) scalars

    x = jax.random.normal(kx, (N, C, H, W), jnp.float32)           # NCHW, like PyTorch
    w = jax.random.normal(kw, (C, C, 3, 3), jnp.float32) * 0.1     # Conv2d weight (OIHW)

    out = jax.block_until_ready(residual_block(x, w, alpha, beta))
    ref = jax.block_until_ready(_reference(x, w, alpha, beta))

    assert out.shape == (N, C, H, W)
    max_err = float(jnp.max(jnp.abs(out - ref)))
    assert max_err < 1e-4, f"max abs err = {max_err}"
    print("KERNEL_OK")
</pallas_src>

<mosaic_0001>
module attributes {stable_mosaic.version = 11 : i64} {
  func.func @_fused_kernel(%arg0: i32, %arg1: memref<32x128xf32, #tpu.memory_space<vmem>>, %arg2: memref<128x384xf32, #tpu.memory_space<vmem>>, %arg3: memref<128x128xf32, #tpu.memory_space<vmem>>, %arg4: memref<32x128xi32, #tpu.memory_space<vmem>>, %arg5: memref<2xf32, #tpu.memory_space<smem>>, %arg6: memref<32x128xf32, #tpu.memory_space<vmem>>) attributes {dimension_semantics = [#tpu.dimension_semantics<arbitrary>], iteration_bounds = array<i64: 1>, scalar_prefetch = 0 : i64, scratch_operands = 0 : i64, tpu.core_type = #tpu.core_type<tc>, window_params = [{pipeline_mode = #tpu.pipeline_mode<synchronous>, transform_indices = @transform_0, window_bounds = array<i64: 32, 128>}, {pipeline_mode = #tpu.pipeline_mode<synchronous>, transform_indices = @transform_1, window_bounds = array<i64: 128, 384>}, {pipeline_mode = #tpu.pipeline_mode<synchronous>, transform_indices = @transform_2, window_bounds = array<i64: 128, 128>}, {pipeline_mode = #tpu.pipeline_mode<synchronous>, transform_indices = @transform_3, window_bounds = array<i64: 32, 128>}, {transform_indices = @transform_4, window_bounds = array<i64: 2>}, {pipeline_mode = #tpu.pipeline_mode<synchronous>, transform_indices = @transform_5, window_bounds = array<i64: 32, 128>}]} {
    %c0 = arith.constant 0 : index
    %c0_0 = arith.constant 0 : index
    %0 = vector.load %arg1[%c0, %c0_0] : memref<32x128xf32, #tpu.memory_space<vmem>>, vector<32x128xf32>
    %c0_1 = arith.constant 0 : index
    %c0_2 = arith.constant 0 : index
    %1 = vector.load %arg4[%c0_1, %c0_2] : memref<32x128xi32, #tpu.memory_space<vmem>>, vector<32x128xi32>
    %2 = tpu.iota {dimensions = array<i32: 1>} : vector<32x128xi32>
    %c0_3 = arith.constant 0 : index
    %c0_4 = arith.constant 0 : index
    %3 = vector.load %arg2[%c0_3, %c0_4] : memref<128x384xf32, #tpu.memory_space<vmem>>, vector<128x384xf32>
    %cst = arith.constant dense<0.000000e+00> : vector<32x384xf32>
    %4 = tpu.matmul %0, %3, %cst {dimension_numbers = #tpu.dot_dimension_numbers<[1], [0], [0], [1], [0, 0, 1, 1], [], []>} : vector<32x128xf32>, vector<128x384xf32>, vector<32x384xf32> -> vector<32x384xf32>
    %5 = vector.extract_strided_slice %4 {offsets = [0, 128], sizes = [32, 128], strides = [1, 1]} : vector<32x384xf32> to vector<32x128xf32>
    %6 = vector.extract_strided_slice %4 {offsets = [0, 0], sizes = [32, 128], strides = [1, 1]} : vector<32x384xf32> to vector<32x128xf32>
    %c1_i32 = arith.constant 1 : i32
    %7 = tpu.dynamic_rotate %6 by %c1_i32 dim 0 : vector<32x128xf32>, i32 -> vector<32x128xf32>
    %c-1_i32 = arith.constant -1 : i32
    %8 = vector.broadcast %c-1_i32 : i32 to vector<32x128xi32>
    %9 = arith.addi %1, %8 : vector<32x128xi32>
    %c0_i32 = arith.constant 0 : i32
    %10 = vector.broadcast %c0_i32 : i32 to vector<32x128xi32>
    %11 = arith.cmpi sge, %9, %10 : vector<32x128xi32>
    %c-1_i32_5 = arith.constant -1 : i32
    %12 = vector.broadcast %c-1_i32_5 : i32 to vector<32x128xi32>
    %13 = arith.addi %1, %12 : vector<32x128xi32>
    %c16_i32 = arith.constant 16 : i32
    %14 = vector.broadcast %c16_i32 : i32 to vector<32x128xi32>
    %15 = arith.cmpi slt, %13, %14 : vector<32x128xi32>
    %16 = arith.andi %11, %15 : vector<32x128xi1>
    %cst_6 = arith.constant 0.000000e+00 : f32
    %17 = vector.broadcast %cst_6 : f32 to vector<32x128xf32>
    %18 = arith.select %16, %7, %17 : vector<32x128xi1>, vector<32x128xf32>
    %19 = arith.addf %5, %18 : vector<32x128xf32>
    %20 = vector.extract_strided_slice %4 {offsets = [0, 256], sizes = [32, 128], strides = [1, 1]} : vector<32x384xf32> to vector<32x128xf32>
    %c31_i32 = arith.constant 31 : i32
    %21 = tpu.dynamic_rotate %20 by %c31_i32 dim 0 : vector<32x128xf32>, i32 -> vector<32x128xf32>
    %c1_i32_7 = arith.constant 1 : i32
    %22 = vector.broadcast %c1_i32_7 : i32 to vector<32x128xi32>
    %23 = arith.addi %1, %22 : vector<32x128xi32>
    %c0_i32_8 = arith.constant 0 : i32
    %24 = vector.broadcast %c0_i32_8 : i32 to vector<32x128xi32>
    %25 = arith.cmpi sge, %23, %24 : vector<32x128xi32>
    %c1_i32_9 = arith.constant 1 : i32
    %26 = vector.broadcast %c1_i32_9 : i32 to vector<32x128xi32>
    %27 = arith.addi %1, %26 : vector<32x128xi32>
    %c16_i32_10 = arith.constant 16 : i32
    %28 = vector.broadcast %c16_i32_10 : i32 to vector<32x128xi32>
    %29 = arith.cmpi slt, %27, %28 : vector<32x128xi32>
    %30 = arith.andi %25, %29 : vector<32x128xi1>
    %cst_11 = arith.constant 0.000000e+00 : f32
    %31 = vector.broadcast %cst_11 : f32 to vector<32x128xf32>
    %32 = arith.select %30, %21, %31 : vector<32x128xi1>, vector<32x128xf32>
    %33 = arith.addf %19, %32 : vector<32x128xf32>
    %c0_12 = arith.constant 0 : index
    %c0_13 = arith.constant 0 : index
    %34 = vector.load %arg3[%c0_12, %c0_13] : memref<128x128xf32, #tpu.memory_space<vmem>>, vector<128x128xf32>
    %cst_14 = arith.constant dense<0.000000e+00> : vector<32x128xf32>
    %35 = tpu.matmul %33, %34, %cst_14 {dimension_numbers = #tpu.dot_dimension_numbers<[1], [0], [0], [1], [0, 0, 1, 1], [], []>} : vector<32x128xf32>, vector<128x128xf32>, vector<32x128xf32> -> vector<32x128xf32>
    %cst_15 = arith.constant dense<0.000000e+00> : vector<128xf32>
    %36 = vector.multi_reduction <add>, %35, %cst_15 [0] : vector<32x128xf32> to vector<128xf32>
    %37 = vector.shape_cast %36 : vector<128xf32> to vector<1x128xf32>
    %cst_16 = arith.constant 0.001953125 : f32
    %38 = vector.broadcast %cst_16 : f32 to vector<1x128xf32>
    %39 = arith.mulf %37, %38 : vector<1x128xf32>
    %40 = vector.broadcast %39 : vector<1x128xf32> to vector<32x128xf32>
    %41 = arith.subf %33, %40 : vector<32x128xf32>
    %42 = arith.mulf %41, %41 : vector<32x128xf32>
    %c0_17 = arith.constant 0 : index
    %c0_18 = arith.constant 0 : index
    %43 = vector.load %arg3[%c0_17, %c0_18] : memref<128x128xf32, #tpu.memory_space<vmem>>, vector<128x128xf32>
    %cst_19 = arith.constant dense<0.000000e+00> : vector<32x128xf32>
    %44 = tpu.matmul %42, %43, %cst_19 {dimension_numbers = #tpu.dot_dimension_numbers<[1], [0], [0], [1], [0, 0, 1, 1], [], []>} : vector<32x128xf32>, vector<128x128xf32>, vector<32x128xf32> -> vector<32x128xf32>
    %cst_20 = arith.constant dense<0.000000e+00> : vector<128xf32>
    %45 = vector.multi_reduction <add>, %44, %cst_20 [0] : vector<32x128xf32> to vector<128xf32>
    %46 = vector.shape_cast %45 : vector<128xf32> to vector<1x128xf32>
    %cst_21 = arith.constant 0.001953125 : f32
    %47 = vector.broadcast %cst_21 : f32 to vector<1x128xf32>
    %48 = arith.mulf %46, %47 : vector<1x128xf32>
    %cst_22 = arith.constant 9.99999974E-6 : f32
    %49 = vector.broadcast %cst_22 : f32 to vector<1x128xf32>
    %50 = arith.addf %48, %49 : vector<1x128xf32>
    %51 = math.rsqrt %50 : vector<1x128xf32>
    %52 = vector.broadcast %51 : vector<1x128xf32> to vector<32x128xf32>
    %53 = arith.mulf %41, %52 : vector<32x128xf32>
    %54 = math.tanh %53 : vector<32x128xf32>
    %c120_i32 = arith.constant 120 : i32
    %55 = tpu.dynamic_rotate %54 by %c120_i32 dim 1 : vector<32x128xf32>, i32 -> vector<32x128xf32>
    %c8_i32 = arith.constant 8 : i32
    %56 = vector.broadcast %c8_i32 : i32 to vector<32x128xi32>
    %57 = arith.addi %2, %56 : vector<32x128xi32>
    %c0_i32_23 = arith.constant 0 : i32
    %58 = vector.broadcast %c0_i32_23 : i32 to vector<32x128xi32>
    %59 = arith.cmpi sge, %57, %58 : vector<32x128xi32>
    %c8_i32_24 = arith.constant 8 : i32
    %60 = vector.broadcast %c8_i32_24 : i32 to vector<32x128xi32>
    %61 = arith.addi %2, %60 : vector<32x128xi32>
    %c128_i32 = arith.constant 128 : i32
    %62 = vector.broadcast %c128_i32 : i32 to vector<32x128xi32>
    %63 = arith.cmpi slt, %61, %62 : vector<32x128xi32>
    %64 = arith.andi %59, %63 : vector<32x128xi1>
    %cst_25 = arith.constant 0.000000e+00 : f32
    %65 = vector.broadcast %cst_25 : f32 to vector<32x128xf32>
    %66 = arith.select %64, %55, %65 : vector<32x128xi1>, vector<32x128xf32>
    %67 = arith.addf %54, %66 : vector<32x128xf32>
    %c8_i32_26 = arith.constant 8 : i32
    %68 = tpu.dynamic_rotate %54 by %c8_i32_26 dim 1 : vector<32x128xf32>, i32 -> vector<32x128xf32>
    %c-8_i32 = arith.constant -8 : i32
    %69 = vector.broadcast %c-8_i32 : i32 to vector<32x128xi32>
    %70 = arith.addi %2, %69 : vector<32x128xi32>
    %c0_i32_27 = arith.constant 0 : i32
    %71 = vector.broadcast %c0_i32_27 : i32 to vector<32x128xi32>
    %72 = arith.cmpi sge, %70, %71 : vector<32x128xi32>
    %c-8_i32_28 = arith.constant -8 : i32
    %73 = vector.broadcast %c-8_i32_28 : i32 to vector<32x128xi32>
    %74 = arith.addi %2, %73 : vector<32x128xi32>
    %c128_i32_29 = arith.constant 128 : i32
    %75 = vector.broadcast %c128_i32_29 : i32 to vector<32x128xi32>
    %76 = arith.cmpi slt, %74, %75 : vector<32x128xi32>
    %77 = arith.andi %72, %76 : vector<32x128xi1>
    %cst_30 = arith.constant 0.000000e+00 : f32
    %78 = vector.broadcast %cst_30 : f32 to vector<32x128xf32>
    %79 = arith.select %77, %68, %78 : vector<32x128xi1>, vector<32x128xf32>
    %80 = arith.addf %67, %79 : vector<32x128xf32>
    %c31_i32_31 = arith.constant 31 : i32
    %81 = tpu.dynamic_rotate %80 by %c31_i32_31 dim 0 : vector<32x128xf32>, i32 -> vector<32x128xf32>
    %c1_i32_32 = arith.constant 1 : i32
    %82 = vector.broadcast %c1_i32_32 : i32 to vector<32x128xi32>
    %83 = arith.addi %1, %82 : vector<32x128xi32>
    %c0_i32_33 = arith.constant 0 : i32
    %84 = vector.broadcast %c0_i32_33 : i32 to vector<32x128xi32>
    %85 = arith.cmpi sge, %83, %84 : vector<32x128xi32>
    %c1_i32_34 = arith.constant 1 : i32
    %86 = vector.broadcast %c1_i32_34 : i32 to vector<32x128xi32>
    %87 = arith.addi %1, %86 : vector<32x128xi32>
    %c16_i32_35 = arith.constant 16 : i32
    %88 = vector.broadcast %c16_i32_35 : i32 to vector<32x128xi32>
    %89 = arith.cmpi slt, %87, %88 : vector<32x128xi32>
    %90 = arith.andi %85, %89 : vector<32x128xi1>
    %cst_36 = arith.constant 0.000000e+00 : f32
    %91 = vector.broadcast %cst_36 : f32 to vector<32x128xf32>
    %92 = arith.select %90, %81, %91 : vector<32x128xi1>, vector<32x128xf32>
    %93 = arith.addf %80, %92 : vector<32x128xf32>
    %c1_i32_37 = arith.constant 1 : i32
    %94 = tpu.dynamic_rotate %80 by %c1_i32_37 dim 0 : vector<32x128xf32>, i32 -> vector<32x128xf32>
    %c-1_i32_38 = arith.constant -1 : i32
    %95 = vector.broadcast %c-1_i32_38 : i32 to vector<32x128xi32>
    %96 = arith.addi %1, %95 : vector<32x128xi32>
    %c0_i32_39 = arith.constant 0 : i32
    %97 = vector.broadcast %c0_i32_39 : i32 to vector<32x128xi32>
    %98 = arith.cmpi sge, %96, %97 : vector<32x128xi32>
    %c-1_i32_40 = arith.constant -1 : i32
    %99 = vector.broadcast %c-1_i32_40 : i32 to vector<32x128xi32>
    %100 = arith.addi %1, %99 : vector<32x128xi32>
    %c16_i32_41 = arith.constant 16 : i32
    %101 = vector.broadcast %c16_i32_41 : i32 to vector<32x128xi32>
    %102 = arith.cmpi slt, %100, %101 : vector<32x128xi32>
    %103 = arith.andi %98, %102 : vector<32x128xi1>
    %cst_42 = arith.constant 0.000000e+00 : f32
    %104 = vector.broadcast %cst_42 : f32 to vector<32x128xf32>
    %105 = arith.select %103, %94, %104 : vector<32x128xi1>, vector<32x128xf32>
    %106 = arith.addf %93, %105 : vector<32x128xf32>
    %cst_43 = arith.constant 0.111111112 : f32
    %107 = vector.broadcast %cst_43 : f32 to vector<32x128xf32>
    %108 = arith.mulf %106, %107 : vector<32x128xf32>
    %c0_44 = arith.constant 0 : index
    %109 = memref.load %arg5[%c0_44] : memref<2xf32, #tpu.memory_space<smem>>
    %110 = vector.broadcast %109 : f32 to vector<32x128xf32>
    %111 = arith.mulf %110, %0 : vector<32x128xf32>
    %c1 = arith.constant 1 : index
    %112 = memref.load %arg5[%c1] : memref<2xf32, #tpu.memory_space<smem>>
    %113 = vector.broadcast %112 : f32 to vector<32x128xf32>
    %114 = arith.mulf %113, %108 : vector<32x128xf32>
    %115 = arith.addf %111, %114 : vector<32x128xf32>
    %c0_45 = arith.constant 0 : index
    %c0_46 = arith.constant 0 : index
    %116 = vector.load %arg6[%c0_45, %c0_46] : memref<32x128xf32, #tpu.memory_space<vmem>>, vector<32x128xf32>
    tpu.vector_store %arg6[%c0_45, %c0_46], %115 {strides = array<i32>} : memref<32x128xf32, #tpu.memory_space<vmem>>, vector<32x128xf32>,
    return
  }
  func.func @transform_0(%arg0: i32) -> (i32, i32) {
    %c0_i32 = arith.constant 0 : i32
    %c0_i32_0 = arith.constant 0 : i32
    %c0_i32_1 = arith.constant 0 : i32
    return %c0_i32, %c0_i32_0 : i32, i32
  }
  func.func @transform_1(%arg0: i32) -> (i32, i32) {
    %c0_i32 = arith.constant 0 : i32
    %c0_i32_0 = arith.constant 0 : i32
    %c0_i32_1 = arith.constant 0 : i32
    return %c0_i32, %c0_i32_0 : i32, i32
  }
  func.func @transform_2(%arg0: i32) -> (i32, i32) {
    %c0_i32 = arith.constant 0 : i32
    %c0_i32_0 = arith.constant 0 : i32
    %c0_i32_1 = arith.constant 0 : i32
    return %c0_i32, %c0_i32_0 : i32, i32
  }
  func.func @transform_3(%arg0: i32) -> (i32, i32) {
    %c0_i32 = arith.constant 0 : i32
    %c0_i32_0 = arith.constant 0 : i32
    %c0_i32_1 = arith.constant 0 : i32
    return %c0_i32, %c0_i32_0 : i32, i32
  }
  func.func @transform_4(%arg0: i32) -> i32 {
    %c0_i32 = arith.constant 0 : i32
    %c0_i32_0 = arith.constant 0 : i32
    return %c0_i32 : i32
  }
  func.func @transform_5(%arg0: i32) -> (i32, i32) {
    %c0_i32 = arith.constant 0 : i32
    %c0_i32_0 = arith.constant 0 : i32
    %c0_i32_1 = arith.constant 0 : i32
    return %c0_i32, %c0_i32_0 : i32, i32
  }
}

</mosaic_0001>

<llo_original>
// kernel: _forward.1
$region0: #{_forward.1}
  #allocation0 [shape = 'u32[]', space=smem, size = 0x4, offset = 0x4, fixed_abs, tag = 'smem constant byte address 0x4 - core index']
  #allocation1 [shape = 'u32[144,128]{1,0:T(1,128)}', space=vmem, size = 0x12000, scoped, tag = 'internal scratch']
  %s0 = inlined_call_operand.vmem [shape: f32[32,128], index: 0, kind: input, shape index: {}]
  %s1 = inlined_call_operand.vmem [shape: f32[128,384], index: 1, kind: input, shape index: {}]
  %s2 = inlined_call_operand.vmem [shape: f32[128,128], index: 2, kind: input, shape index: {}]
  %s3 = inlined_call_operand.vmem [shape: s32[32,128], index: 3, kind: input, shape index: {}]
  %s4 = inlined_call_operand.vmem [shape: f32[2], index: 4, kind: input, shape index: {}]
  %s5 = inlined_call_operand.vmem [shape: f32[32,128], index: 5, kind: output, shape index: {}]
  %s6 = sld [smem:[#allocation0]]
  $region34: #{_forward.1} parent=0
    _
  %s8 = ssub.s32 1, %s6
  %s9 = scalar_select 0, %s8, %s6
  $region1: #{_forward.1} parent=0
    #allocation2 [shape = 'u8[512]{0}', space=smem, size = 0x200, scoped, tag = 'input window, operand 4, single buffered']
    #allocation3 [shape = 's32[1]{0}', space=sflag, size = 0x4, scoped, tag = 'scoped memory for _forward.1']
    %10 = vsyncpa [#allocation3], 0
    // Predicated region
    $region2: #{_forward.1} parent=1 // pred_check
      _
    $region3: #{_forward.1} parent=1 // pred_check_branch
      %12 = sbr.rel (0) target = $region5
    $region4: #{_forward.1} parent=1 // pred_region
      _
    $region5: #{_forward.1} parent=1 // pred_fallthru
      _
    // Predicated region
    $region6: #{_forward.1} parent=1 // pred_check
      _
    $region7: #{_forward.1} parent=1 // pred_check_branch
      %14 = sbr.rel (0) target = $region9
    $region8: #{_forward.1} parent=1 // pred_region
      _
    $region9: #{_forward.1} parent=1 // pred_fallthru
      _
    // Predicated region
    $region10: #{_forward.1} parent=1 // pred_check
      _
    $region11: #{_forward.1} parent=1 // pred_check_branch
      %16 = sbr.rel (0) target = $region13
    $region12: #{_forward.1} parent=1 // pred_region
      _
    $region13: #{_forward.1} parent=1 // pred_fallthru
      _
    // Predicated region
    $region14: #{_forward.1} parent=1 // pred_check
      _
    $region15: #{_forward.1} parent=1 // pred_check_branch
      %18 = sbr.rel (0) target = $region17
    $region16: #{_forward.1} parent=1 // pred_region
      _
    $region17: #{_forward.1} parent=1 // pred_fallthru
      _
    // Predicated region
    $region18: #{_forward.1} parent=1 // pred_check
      _
    $region19: #{_forward.1} parent=1 // pred_check_branch
      %20 = sbr.rel (0) target = $region21
    $region20: #{_forward.1} parent=1 // pred_region
      %s22 = ssub.s32 16, 16
      %23 = vsyncadd [#allocation3], %s22
      %s25 = sshll.u32 %s4, 4
      %s26 = int_to_ptr.vmem [resolvable:$true] %s25
      %28 = dma.vmem_to_smem %s26, 16, [#allocation2], [#allocation3]
    $region21: #{_forward.1} parent=1 // pred_fallthru
      _
    // Predicated region
    $region22: #{_forward.1} parent=1 // pred_check
      _
    $region23: #{_forward.1} parent=1 // pred_check_branch
      %30 = sbr.rel (0) target = $region25
    $region24: #{_forward.1} parent=1 // pred_region
      %31 = dma.done [#allocation3], 16
    $region25: #{_forward.1} parent=1 // pred_fallthru
      _
    %32 = sfence
    %v33 = vld [vmem:[%s0] sm:$0xff]
    %v34 = vld [vmem:[%s0 + $0x8] sm:$0xff]
    %v35 = vld [vmem:[%s0 + $0x10] sm:$0xff]
    %v36 = vld [vmem:[%s0 + $0x18] sm:$0xff]
    %v37 = vld [vmem:[%s3] sm:$0xff]
    %v38 = vld [vmem:[%s3 + $0x8] sm:$0xff]
    %v39 = vld [vmem:[%s3 + $0x10] sm:$0xff]
    %v40 = vld [vmem:[%s3 + $0x18] sm:$0xff]
    %v41 = vlaneseq
    %v42 = vand.u32 %v41, 127
    %v43 = vld [vmem:[%s1] sm:$0xff]
    %v44 = vld [vmem:[%s1 + $0x8] sm:$0xff]
    %v45 = vld [vmem:[%s1 + $0x10] sm:$0xff]
    %v46 = vld [vmem:[%s1 + $0x18] sm:$0xff]
    %v47 = vld [vmem:[%s1 + $0x20] sm:$0xff]
    %v48 = vld [vmem:[%s1 + $0x28] sm:$0xff]
    %v49 = vld [vmem:[%s1 + $0x30] sm:$0xff]
    %v50 = vld [vmem:[%s1 + $0x38] sm:$0xff]
    %v51 = vld [vmem:[%s1 + $0x40] sm:$0xff]
    %v52 = vld [vmem:[%s1 + $0x48] sm:$0xff]
    %v53 = vld [vmem:[%s1 + $0x50] sm:$0xff]
    %v54 = vld [vmem:[%s1 + $0x58] sm:$0xff]
    %v55 = vld [vmem:[%s1 + $0x60] sm:$0xff]
    %v56 = vld [vmem:[%s1 + $0x68] sm:$0xff]
    %v57 = vld [vmem:[%s1 + $0x70] sm:$0xff]
    %v58 = vld [vmem:[%s1 + $0x78] sm:$0xff]
    %v59 = vld [vmem:[%s1 + $0x80] sm:$0xff]
    %v60 = vld [vmem:[%s1 + $0x88] sm:$0xff]
    %v61 = vld [vmem:[%s1 + $0x90] sm:$0xff]
    %v62 = vld [vmem:[%s1 + $0x98] sm:$0xff]
    %v63 = vld [vmem:[%s1 + $0xa0] sm:$0xff]
    %v64 = vld [vmem:[%s1 + $0xa8] sm:$0xff]
    %v65 = vld [vmem:[%s1 + $0xb0] sm:$0xff]
    %v66 = vld [vmem:[%s1 + $0xb8] sm:$0xff]
    %v67 = vld [vmem:[%s1 + $0xc0] sm:$0xff]
    %v68 = vld [vmem:[%s1 + $0xc8] sm:$0xff]
    %v69 = vld [vmem:[%s1 + $0xd0] sm:$0xff]
    %v70 = vld [vmem:[%s1 + $0xd8] sm:$0xff]
    %v71 = vld [vmem:[%s1 + $0xe0] sm:$0xff]
    %v72 = vld [vmem:[%s1 + $0xe8] sm:$0xff]
    %v73 = vld [vmem:[%s1 + $0xf0] sm:$0xff]
    %v74 = vld [vmem:[%s1 + $0xf8] sm:$0xff]
    %v75 = vld [vmem:[%s1 + $0x100] sm:$0xff]
    %v76 = vld [vmem:[%s1 + $0x108] sm:$0xff]
    %v77 = vld [vmem:[%s1 + $0x110] sm:$0xff]
    %v78 = vld [vmem:[%s1 + $0x118] sm:$0xff]
    %v79 = vld [vmem:[%s1 + $0x120] sm:$0xff]
    %v80 = vld [vmem:[%s1 + $0x128] sm:$0xff]
    %v81 = vld [vmem:[%s1 + $0x130] sm:$0xff]
    %v82 = vld [vmem:[%s1 + $0x138] sm:$0xff]
    %v83 = vld [vmem:[%s1 + $0x140] sm:$0xff]
    %v84 = vld [vmem:[%s1 + $0x148] sm:$0xff]
    %v85 = vld [vmem:[%s1 + $0x150] sm:$0xff]
    %v86 = vld [vmem:[%s1 + $0x158] sm:$0xff]
    %v87 = vld [vmem:[%s1 + $0x160] sm:$0xff]
    %v88 = vld [vmem:[%s1 + $0x168] sm:$0xff]
    %v89 = vld [vmem:[%s1 + $0x170] sm:$0xff]
    %v90 = vld [vmem:[%s1 + $0x178] sm:$0xff]
    %91 = vmatprep.subr.mxu0 %v44
    %92 = vmatpush1.msra.mxu0 %v43
    %93 = vmatprep.subr.mxu0 %v47
    %94 = vmatpush1.msra.mxu0 %v46
    %95 = vmatprep.subr.mxu0 %v50
    %96 = vmatpush1.msra.mxu0 %v49
    %97 = vmatprep.subr.mxu0 %v53
    %98 = vmatpush1.msra.mxu0 %v52
    %99 = vmatprep.subr.mxu0 %v56
    %100 = vmatpush1.msra.mxu0 %v55
    %101 = vmatprep.subr.mxu0 %v59
    %102 = vmatpush1.msra.mxu0 %v58
    %103 = vmatprep.subr.mxu0 %v62
    %104 = vmatpush1.msra.mxu0 %v61
    %105 = vmatprep.subr.mxu0 %v65
    %106 = vmatpush1.msra.mxu0 %v64
    %107 = vmatprep.subr.mxu0 %v68
    %108 = vmatpush1.msra.mxu0 %v67
    %109 = vmatprep.subr.mxu0 %v71
    %110 = vmatpush1.msra.mxu0 %v70
    %111 = vmatprep.subr.mxu0 %v74
    %112 = vmatpush1.msra.mxu0 %v73
    %113 = vmatprep.subr.mxu0 %v77
    %114 = vmatpush1.msra.mxu0 %v76
    %115 = vmatprep.subr.mxu0 %v80
    %116 = vmatpush1.msra.mxu0 %v79
    %117 = vmatprep.subr.mxu0 %v83
    %118 = vmatpush1.msra.mxu0 %v82
    %119 = vmatprep.subr.mxu0 %v86
    %120 = vmatpush1.msra.mxu0 %v85
    %121 = vmatprep.subr.mxu0 %v89
    %122 = vmatpush1.msra.mxu0 %v88
    %123 = vmatprep.subr.mxu0 0.0
    %124 = vmatpush1.msra.mxu0 0.0
    %125 = vmatprep.subr.mxu0 0.0
    %126 = vmatpush1.msra.mxu0 0.0
    %127 = vmatprep.subr.mxu0 0.0
    %128 = vmatpush1.msra.mxu0 0.0
    %129 = vmatprep.subr.mxu0 0.0
    %130 = vmatpush1.msra.mxu0 0.0
    %131 = vmatprep.subr.mxu0 0.0
    %132 = vmatpush1.msra.mxu0 0.0
    %133 = vmatprep.subr.mxu0 0.0
    %134 = vmatpush1.msra.mxu0 0.0
    %135 = vmatprep.subr.mxu0 0.0
    %136 = vmatpush1.msra.mxu0 0.0
    %137 = vmatprep.subr.mxu0 0.0
    %138 = vmatpush1.msra.mxu0 0.0
    %139 = vmatprep.subr.mxu0 0.0
    %140 = vmatpush1.msra.mxu0 0.0
    %141 = vmatprep.subr.mxu0 0.0
    %142 = vmatpush1.msra.mxu0 0.0
    %143 = vmatprep.subr.mxu0 0.0
    %144 = vmatpush1.msra.mxu0 0.0
    %145 = vmatprep.subr.mxu0 0.0
    %146 = vmatpush1.msra.mxu0 0.0
    %147 = vmatprep.subr.mxu0 0.0
    %148 = vmatpush1.msra.mxu0 0.0
    %149 = vmatprep.subr.mxu0 0.0
    %150 = vmatpush1.msra.mxu0 0.0
    %151 = vmatprep.subr.mxu0 0.0
    %152 = vmatpush1.msra.mxu0 0.0
    %153 = vmatprep.subr.mxu0 0.0
    %154 = vmatpush1.msra.mxu0 0.0
    %155 = vmatprep.mubr.f32.mxu0 0.0
    %156 = vmatmul.mubr.f32.gmra.mrb[0].mxu0 %v33
    %v157 = vpop.f32.mrb[0].mxu0
    %v158 = vadd.f32 0.0, %v157
    %v159 = vpop.f32.mrb[0].mxu0
    %v160 = vadd.f32 0.0, %v159
    %161 = vmatprep.mubr.f32.mxu0 0.0
    %162 = vmatmul.mubr.f32.gmra.mrb[0].mxu0 %v34
    %v163 = vpop.f32.mrb[0].mxu0
    %v164 = vadd.f32 0.0, %v163
    %v165 = vpop.f32.mrb[0].mxu0
    %v166 = vadd.f32 0.0, %v165
    %167 = vmatprep.mubr.f32.mxu0 0.0
    %168 = vmatmul.mubr.f32.gmra.mrb[0].mxu0 %v35
    %v169 = vpop.f32.mrb[0].mxu0
    %v170 = vadd.f32 0.0, %v169
    %v171 = vpop.f32.mrb[0].mxu0
    %v172 = vadd.f32 0.0, %v171
    %173 = vmatprep.mubr.f32.mxu0 0.0
    %174 = vmatmul.mubr.f32.gmra.mrb[0].mxu0 %v36
    %v175 = vpop.f32.mrb[0].mxu0
    %v176 = vadd.f32 0.0, %v175
    %v177 = vpop.f32.mrb[0].mxu0
    %v178 = vadd.f32 0.0, %v177
    %179 = vdwg.mxu0
    %180 = vmatprep.subr.mxu0 0.0
    %181 = vmatpush1.msra.mxu0 %v45
    %182 = vmatprep.subr.mxu0 0.0
    %183 = vmatpush1.msra.mxu0 %v48
    %184 = vmatprep.subr.mxu0 0.0
    %185 = vmatpush1.msra.mxu0 %v51
    %186 = vmatprep.subr.mxu0 0.0
    %187 = vmatpush1.msra.mxu0 %v54
    %188 = vmatprep.subr.mxu0 0.0
    %189 = vmatpush1.msra.mxu0 %v57
    %190 = vmatprep.subr.mxu0 0.0
    %191 = vmatpush1.msra.mxu0 %v60
    %192 = vmatprep.subr.mxu0 0.0
    %193 = vmatpush1.msra.mxu0 %v63
    %194 = vmatprep.subr.mxu0 0.0
    %195 = vmatpush1.msra.mxu0 %v66
    %196 = vmatprep.subr.mxu0 0.0
    %197 = vmatpush1.msra.mxu0 %v69
    %198 = vmatprep.subr.mxu0 0.0
    %199 = vmatpush1.msra.mxu0 %v72
    %200 = vmatprep.subr.mxu0 0.0
    %201 = vmatpush1.msra.mxu0 %v75
    %202 = vmatprep.subr.mxu0 0.0
    %203 = vmatpush1.msra.mxu0 %v78
    %204 = vmatprep.subr.mxu0 0.0
    %205 = vmatpush1.msra.mxu0 %v81
    %206 = vmatprep.subr.mxu0 0.0
    %207 = vmatpush1.msra.mxu0 %v84
    %208 = vmatprep.subr.mxu0 0.0
    %209 = vmatpush1.msra.mxu0 %v87
    %210 = vmatprep.subr.mxu0 0.0
    %211 = vmatpush1.msra.mxu0 %v90
    %212 = vmatprep.subr.mxu0 0.0
    %213 = vmatpush1.msra.mxu0 0.0
    %214 = vmatprep.subr.mxu0 0.0
    %215 = vmatpush1.msra.mxu0 0.0
    %216 = vmatprep.subr.mxu0 0.0
    %217 = vmatpush1.msra.mxu0 0.0
    %218 = vmatprep.subr.mxu0 0.0
    %219 = vmatpush1.msra.mxu0 0.0
    %220 = vmatprep.subr.mxu0 0.0
    %221 = vmatpush1.msra.mxu0 0.0
    %222 = vmatprep.subr.mxu0 0.0
    %223 = vmatpush1.msra.mxu0 0.0
    %224 = vmatprep.subr.mxu0 0.0
    %225 = vmatpush1.msra.mxu0 0.0
    %226 = vmatprep.subr.mxu0 0.0
    %227 = vmatpush1.msra.mxu0 0.0
    %228 = vmatprep.subr.mxu0 0.0
    %229 = vmatpush1.msra.mxu0 0.0
    %230 = vmatprep.subr.mxu0 0.0
    %231 = vmatpush1.msra.mxu0 0.0
    %232 = vmatprep.subr.mxu0 0.0
    %233 = vmatpush1.msra.mxu0 0.0
    %234 = vmatprep.subr.mxu0 0.0
    %235 = vmatpush1.msra.mxu0 0.0
    %236 = vmatprep.subr.mxu0 0.0
    %237 = vmatpush1.msra.mxu0 0.0
    %238 = vmatprep.subr.mxu0 0.0
    %239 = vmatpush1.msra.mxu0 0.0
    %240 = vmatprep.subr.mxu0 0.0
    %241 = vmatpush1.msra.mxu0 0.0
    %242 = vmatprep.subr.mxu0 0.0
    %243 = vmatpush1.msra.mxu0 0.0
    %244 = vmatprep.mubr.f32.mxu0 0.0
    %245 = vmatmul.mubr.f32.gmra.mrb[0].mxu0 %v33
    %v246 = vpop.f32.mrb[0].mxu0
    %v247 = vadd.f32 0.0, %v246
    %v248 = vpop.f32.mrb[0].mxu0
    %249 = vmatprep.mubr.f32.mxu0 0.0
    %250 = vmatmul.mubr.f32.gmra.mrb[0].mxu0 %v34
    %v251 = vpop.f32.mrb[0].mxu0
    %v252 = vadd.f32 0.0, %v251
    %v253 = vpop.f32.mrb[0].mxu0
    %254 = vmatprep.mubr.f32.mxu0 0.0
    %255 = vmatmul.mubr.f32.gmra.mrb[0].mxu0 %v35
    %v256 = vpop.f32.mrb[0].mxu0
    %v257 = vadd.f32 0.0, %v256
    %v258 = vpop.f32.mrb[0].mxu0
    %259 = vmatprep.mubr.f32.mxu0 0.0
    %260 = vmatmul.mubr.f32.gmra.mrb[0].mxu0 %v36
    %v261 = vpop.f32.mrb[0].mxu0
    %v262 = vadd.f32 0.0, %v261
    %v263 = vpop.f32.mrb[0].mxu0
    %264 = vdwg.mxu0
    %v265 = vrot.slane %v158, 7
    %v266 = vrot.slane %v164, 7
    %v267 = vrot.slane %v170, 7
    %v268 = vrot.slane %v176, 7
    %v269 = vlaneseq
    %v270 = vshrl.u32 %v269, 7
    %vm271 = vcmp.lt.s32.totalorder %v270, 1
    %v272 = vsel %vm271, %v267, %v268
    %v273 = vsel %vm271, %v266, %v267
    %v274 = vsel %vm271, %v265, %v266
    %v275 = vsel %vm271, %v268, %v265
    %v276 = vadd.s32 %v37, 4294967295
    %v277 = vadd.s32 %v38, 4294967295
    %v278 = vadd.s32 %v39, 4294967295
    %v279 = vadd.s32 %v40, 4294967295
    %vm280 = vcmp.ge.s32.totalorder %v276, 0
    %vm281 = vcmp.ge.s32.totalorder %v277, 0
    %vm282 = vcmp.ge.s32.totalorder %v278, 0
    %vm283 = vcmp.ge.s32.totalorder %v279, 0
    %vm284 = vcmp.lt.s32.totalorder %v276, 16
    %vm285 = vcmp.lt.s32.totalorder %v277, 16
    %vm286 = vcmp.lt.s32.totalorder %v278, 16
    %vm287 = vcmp.lt.s32.totalorder %v279, 16
    %vm288 = vmand %vm280, %vm284
    %vm289 = vmand %vm281, %vm285
    %vm290 = vmand %vm282, %vm286
    %vm291 = vmand %vm283, %vm287
    %v292 = vsel %vm288, %v275, 0.0
    %v293 = vsel %vm289, %v274, 0.0
    %v294 = vsel %vm290, %v273, 0.0
    %v295 = vsel %vm291, %v272, 0.0
    %v296 = vadd.f32 %v160, %v292
    %v297 = vadd.f32 %v166, %v293
    %v298 = vadd.f32 %v172, %v294
    %v299 = vadd.f32 %v178, %v295
    %v300 = vrot.slane %v247, 1
    %v301 = vrot.slane %v252, 1
    %v302 = vrot.slane %v257, 1
    %v303 = vrot.slane %v262, 1
    %vm304 = vcmp.lt.s32.totalorder %v270, 7
    %v305 = vsel %vm304, %v302, %v303
    %v306 = vsel %vm304, %v301, %v302
    %v307 = vsel %vm304, %v300, %v301
    %v308 = vsel %vm304, %v303, %v300
    %v309 = vadd.s32 %v37, 1
    %v310 = vadd.s32 %v38, 1
    %v311 = vadd.s32 %v39, 1
    %v312 = vadd.s32 %v40, 1
    %vm313 = vcmp.ge.s32.totalorder %v309, 0
    %vm314 = vcmp.ge.s32.totalorder %v310, 0
    %vm315 = vcmp.ge.s32.totalorder %v311, 0
    %vm316 = vcmp.ge.s32.totalorder %v312, 0
    %vm317 = vcmp.lt.s32.totalorder %v309, 16
    %vm318 = vcmp.lt.s32.totalorder %v310, 16
    %vm319 = vcmp.lt.s32.totalorder %v311, 16
    %vm320 = vcmp.lt.s32.totalorder %v312, 16
    %vm321 = vmand %vm313, %vm317
    %vm322 = vmand %vm314, %vm318
    %vm323 = vmand %vm315, %vm319
    %vm324 = vmand %vm316, %vm320
    %v325 = vsel %vm321, %v307, 0.0
    %v326 = vsel %vm322, %v306, 0.0
    %v327 = vsel %vm323, %v305, 0.0
    %v328 = vsel %vm324, %v308, 0.0
    %v329 = vadd.f32 %v296, %v325
    %v330 = vadd.f32 %v297, %v326
    %v331 = vadd.f32 %v298, %v327
    %v332 = vadd.f32 %v299, %v328
    %v333 = vld [vmem:[%s2] sm:$0xff]
    %v334 = vld [vmem:[%s2 + $0x8] sm:$0xff]
    %v335 = vld [vmem:[%s2 + $0x10] sm:$0xff]
    %v336 = vld [vmem:[%s2 + $0x18] sm:$0xff]
    %v337 = vld [vmem:[%s2 + $0x20] sm:$0xff]
    %v338 = vld [vmem:[%s2 + $0x28] sm:$0xff]
    %v339 = vld [vmem:[%s2 + $0x30] sm:$0xff]
    %v340 = vld [vmem:[%s2 + $0x38] sm:$0xff]
    %v341 = vld [vmem:[%s2 + $0x40] sm:$0xff]
    %v342 = vld [vmem:[%s2 + $0x48] sm:$0xff]
    %v343 = vld [vmem:[%s2 + $0x50] sm:$0xff]
    %v344 = vld [vmem:[%s2 + $0x58] sm:$0xff]
    %v345 = vld [vmem:[%s2 + $0x60] sm:$0xff]
    %v346 = vld [vmem:[%s2 + $0x68] sm:$0xff]
    %v347 = vld [vmem:[%s2 + $0x70] sm:$0xff]
    %v348 = vld [vmem:[%s2 + $0x78] sm:$0xff]
    %349 = vmatprep.subr.mxu0 0.0
    %350 = vmatpush1.msra.mxu0 %v333
    %351 = vmatprep.subr.mxu0 0.0
    %352 = vmatpush1.msra.mxu0 %v334
    %353 = vmatprep.subr.mxu0 0.0
    %354 = vmatpush1.msra.mxu0 %v335
    %355 = vmatprep.subr.mxu0 0.0
    %356 = vmatpush1.msra.mxu0 %v336
    %357 = vmatprep.subr.mxu0 0.0
    %358 = vmatpush1.msra.mxu0 %v337
    %359 = vmatprep.subr.mxu0 0.0
    %360 = vmatpush1.msra.mxu0 %v338
    %361 = vmatprep.subr.mxu0 0.0
    %362 = vmatpush1.msra.mxu0 %v339
    %363 = vmatprep.subr.mxu0 0.0
    %364 = vmatpush1.msra.mxu0 %v340
    %365 = vmatprep.subr.mxu0 0.0
    %366 = vmatpush1.msra.mxu0 %v341
    %367 = vmatprep.subr.mxu0 0.0
    %368 = vmatpush1.msra.mxu0 %v342
    %369 = vmatprep.subr.mxu0 0.0
    %370 = vmatpush1.msra.mxu0 %v343
    %371 = vmatprep.subr.mxu0 0.0
    %372 = vmatpush1.msra.mxu0 %v344
    %373 = vmatprep.subr.mxu0 0.0
    %374 = vmatpush1.msra.mxu0 %v345
    %375 = vmatprep.subr.mxu0 0.0
    %376 = vmatpush1.msra.mxu0 %v346
    %377 = vmatprep.subr.mxu0 0.0
    %378 = vmatpush1.msra.mxu0 %v347
    %379 = vmatprep.subr.mxu0 0.0
    %380 = vmatpush1.msra.mxu0 %v348
    %381 = vmatprep.subr.mxu0 0.0
    %382 = vmatpush1.msra.mxu0 0.0
    %383 = vmatprep.subr.mxu0 0.0
    %384 = vmatpush1.msra.mxu0 0.0
    %385 = vmatprep.subr.mxu0 0.0
    %386 = vmatpush1.msra.mxu0 0.0
    %387 = vmatprep.subr.mxu0 0.0
    %388 = vmatpush1.msra.mxu0 0.0
    %389 = vmatprep.subr.mxu0 0.0
    %390 = vmatpush1.msra.mxu0 0.0
    %391 = vmatprep.subr.mxu0 0.0
    %392 = vmatpush1.msra.mxu0 0.0
    %393 = vmatprep.subr.mxu0 0.0
    %394 = vmatpush1.msra.mxu0 0.0
    %395 = vmatprep.subr.mxu0 0.0
    %396 = vmatpush1.msra.mxu0 0.0
    %397 = vmatprep.subr.mxu0 0.0
    %398 = vmatpush1.msra.mxu0 0.0
    %399 = vmatprep.subr.mxu0 0.0
    %400 = vmatpush1.msra.mxu0 0.0
    %401 = vmatprep.subr.mxu0 0.0
    %402 = vmatpush1.msra.mxu0 0.0
    %403 = vmatprep.subr.mxu0 0.0
    %404 = vmatpush1.msra.mxu0 0.0
    %405 = vmatprep.subr.mxu0 0.0
    %406 = vmatpush1.msra.mxu0 0.0
    %407 = vmatprep.subr.mxu0 0.0
    %408 = vmatpush1.msra.mxu0 0.0
    %409 = vmatprep.subr.mxu0 0.0
    %410 = vmatpush1.msra.mxu0 0.0
    %411 = vmatprep.subr.mxu0 0.0
    %412 = vmatpush1.msra.mxu0 0.0
    %413 = vmatprep.mubr.f32.mxu0 0.0
    %414 = vmatmul.mubr.f32.gmra.mrb[0].mxu0 %v329
    %v415 = vpop.f32.mrb[0].mxu0
    %v416 = vadd.f32 0.0, %v415
    %v417 = vpop.f32.mrb[0].mxu0
    %418 = vmatprep.mubr.f32.mxu0 0.0
    %419 = vmatmul.mubr.f32.gmra.mrb[0].mxu0 %v330
    %v420 = vpop.f32.mrb[0].mxu0
    %v421 = vadd.f32 0.0, %v420
    %v422 = vpop.f32.mrb[0].mxu0
    %423 = vmatprep.mubr.f32.mxu0 0.0
    %424 = vmatmul.mubr.f32.gmra.mrb[0].mxu0 %v331
    %v425 = vpop.f32.mrb[0].mxu0
    %v426 = vadd.f32 0.0, %v425
    %v427 = vpop.f32.mrb[0].mxu0
    %428 = vmatprep.mubr.f32.mxu0 0.0
    %429 = vmatmul.mubr.f32.gmra.mrb[0].mxu0 %v332
    %v430 = vpop.f32.mrb[0].mxu0
    %v431 = vadd.f32 0.0, %v430
    %v432 = vpop.f32.mrb[0].mxu0
    %433 = vdwg.mxu0
    %v434 = vadd.f32 %v416, %v421
    %v435 = vadd.f32 %v434, %v426
    %v436 = vadd.f32 %v435, %v431
    %v437 = vrot.slane %v436, 4
    %v438 = vadd.f32 %v436, %v437
    %v439 = vrot.slane %v438, 2
    %v440 = vadd.f32 %v438, %v439
    %v441 = vrot.slane %v440, 1
    %v442 = vadd.f32 %v440, %v441
    %v443 = vmul.f32 %v442, 0.001953125
    %v444 = vsub.f32 %v329, %v443
    %v445 = vsub.f32 %v330, %v443
    %v446 = vsub.f32 %v331, %v443
    %v447 = vsub.f32 %v332, %v443
    %v448 = vmul.f32 %v444, %v444
    %v449 = vmul.f32 %v445, %v445
    %v450 = vmul.f32 %v446, %v446
    %v451 = vmul.f32 %v447, %v447
    %452 = vmatprep.subr.mxu0 0.0
    %453 = vmatpush1.msra.mxu0 %v333
    %454 = vmatprep.subr.mxu0 0.0
    %455 = vmatpush1.msra.mxu0 %v334
    %456 = vmatprep.subr.mxu0 0.0
    %457 = vmatpush1.msra.mxu0 %v335
    %458 = vmatprep.subr.mxu0 0.0
    %459 = vmatpush1.msra.mxu0 %v336
    %460 = vmatprep.subr.mxu0 0.0
    %461 = vmatpush1.msra.mxu0 %v337
    %462 = vmatprep.subr.mxu0 0.0
    %463 = vmatpush1.msra.mxu0 %v338
    %464 = vmatprep.subr.mxu0 0.0
    %465 = vmatpush1.msra.mxu0 %v339
    %466 = vmatprep.subr.mxu0 0.0
    %467 = vmatpush1.msra.mxu0 %v340
    %468 = vmatprep.subr.mxu0 0.0
    %469 = vmatpush1.msra.mxu0 %v341
    %470 = vmatprep.subr.mxu0 0.0
    %471 = vmatpush1.msra.mxu0 %v342
    %472 = vmatprep.subr.mxu0 0.0
    %473 = vmatpush1.msra.mxu0 %v343
    %474 = vmatprep.subr.mxu0 0.0
    %475 = vmatpush1.msra.mxu0 %v344
    %476 = vmatprep.subr.mxu0 0.0
    %477 = vmatpush1.msra.mxu0 %v345
    %478 = vmatprep.subr.mxu0 0.0
    %479 = vmatpush1.msra.mxu0 %v346
    %480 = vmatprep.subr.mxu0 0.0
    %481 = vmatpush1.msra.mxu0 %v347
    %482 = vmatprep.subr.mxu0 0.0
    %483 = vmatpush1.msra.mxu0 %v348
    %484 = vmatprep.subr.mxu0 0.0
    %485 = vmatpush1.msra.mxu0 0.0
    %486 = vmatprep.subr.mxu0 0.0
    %487 = vmatpush1.msra.mxu0 0.0
    %488 = vmatprep.subr.mxu0 0.0
    %489 = vmatpush1.msra.mxu0 0.0
    %490 = vmatprep.subr.mxu0 0.0
    %491 = vmatpush1.msra.mxu0 0.0
    %492 = vmatprep.subr.mxu0 0.0
    %493 = vmatpush1.msra.mxu0 0.0
    %494 = vmatprep.subr.mxu0 0.0
    %495 = vmatpush1.msra.mxu0 0.0
    %496 = vmatprep.subr.mxu0 0.0
    %497 = vmatpush1.msra.mxu0 0.0
    %498 = vmatprep.subr.mxu0 0.0
    %499 = vmatpush1.msra.mxu0 0.0
    %500 = vmatprep.subr.mxu0 0.0
    %501 = vmatpush1.msra.mxu0 0.0
    %502 = vmatprep.subr.mxu0 0.0
    %503 = vmatpush1.msra.mxu0 0.0
    %504 = vmatprep.subr.mxu0 0.0
    %505 = vmatpush1.msra.mxu0 0.0
    %506 = vmatprep.subr.mxu0 0.0
    %507 = vmatpush1.msra.mxu0 0.0
    %508 = vmatprep.subr.mxu0 0.0
    %509 = vmatpush1.msra.mxu0 0.0
    %510 = vmatprep.subr.mxu0 0.0
    %511 = vmatpush1.msra.mxu0 0.0
    %512 = vmatprep.subr.mxu0 0.0
    %513 = vmatpush1.msra.mxu0 0.0
    %514 = vmatprep.subr.mxu0 0.0
    %515 = vmatpush1.msra.mxu0 0.0
    %516 = vmatprep.mubr.f32.mxu0 0.0
    %517 = vmatmul.mubr.f32.gmra.mrb[0].mxu0 %v448
    %v518 = vpop.f32.mrb[0].mxu0
    %v519 = vadd.f32 0.0, %v518
    %v520 = vpop.f32.mrb[0].mxu0
    %521 = vmatprep.mubr.f32.mxu0 0.0
    %522 = vmatmul.mubr.f32.gmra.mrb[0].mxu0 %v449
    %v523 = vpop.f32.mrb[0].mxu0
    %v524 = vadd.f32 0.0, %v523
    %v525 = vpop.f32.mrb[0].mxu0
    %526 = vmatprep.mubr.f32.mxu0 0.0
    %527 = vmatmul.mubr.f32.gmra.mrb[0].mxu0 %v450
    %v528 = vpop.f32.mrb[0].mxu0
    %v529 = vadd.f32 0.0, %v528
    %v530 = vpop.f32.mrb[0].mxu0
    %531 = vmatprep.mubr.f32.mxu0 0.0
    %532 = vmatmul.mubr.f32.gmra.mrb[0].mxu0 %v451
    %v533 = vpop.f32.mrb[0].mxu0
    %v534 = vadd.f32 0.0, %v533
    %v535 = vpop.f32.mrb[0].mxu0
    %536 = vdwg.mxu0
    %v537 = vadd.f32 %v519, %v524
    %v538 = vadd.f32 %v537, %v529
    %v539 = vadd.f32 %v538, %v534
    %v540 = vrot.slane %v539, 4
    %v541 = vadd.f32 %v539, %v540
    %v542 = vrot.slane %v541, 2
    %v543 = vadd.f32 %v541, %v542
    %v544 = vrot.slane %v543, 1
    %v545 = vadd.f32 %v543, %v544
    %v546 = vmul.f32 %v545, 0.001953125
    %v547 = vadd.f32 %v546, 1e-05
    %v548 = vrsqrt.pop %v547
    %v549 = vmul.f32 %v444, %v548
    %v550 = vmul.f32 %v445, %v548
    %v551 = vmul.f32 %v446, %v548
    %v552 = vmul.f32 %v447, %v548
    %v553 = vtanh.pop %v549
    %v554 = vtanh.pop %v550
    %v555 = vtanh.pop %v551
    %v556 = vtanh.pop %v552
    %557 = vrot.lane.b32.xlu0 %v553, 120
    %v558 = vpop.permute.xlu0 %557
    %559 = vrot.lane.b32.xlu0 %v554, 120
    %v560 = vpop.permute.xlu0 %559
    %561 = vrot.lane.b32.xlu0 %v555, 120
    %v562 = vpop.permute.xlu0 %561
    %563 = vrot.lane.b32.xlu0 %v556, 120
    %v564 = vpop.permute.xlu0 %563
    %v565 = vadd.s32 %v42, 8
    %vm566 = vcmp.ge.s32.totalorder %v565, 0
    %vm567 = vcmp.lt.s32.totalorder %v565, 128
    %vm568 = vmand %vm566, %vm567
    %v569 = vsel %vm568, %v558, 0.0
    %v570 = vsel %vm568, %v560, 0.0
    %v571 = vsel %vm568, %v562, 0.0
    %v572 = vsel %vm568, %v564, 0.0
    %v573 = vadd.f32 %v553, %v569
    %v574 = vadd.f32 %v554, %v570
    %v575 = vadd.f32 %v555, %v571
    %v576 = vadd.f32 %v556, %v572
    %577 = vrot.lane.b32.xlu0 %v553, 8
    %v578 = vpop.permute.xlu0 %577
    %579 = vrot.lane.b32.xlu0 %v554, 8
    %v580 = vpop.permute.xlu0 %579
    %581 = vrot.lane.b32.xlu0 %v555, 8
    %v582 = vpop.permute.xlu0 %581
    %583 = vrot.lane.b32.xlu0 %v556, 8
    %v584 = vpop.permute.xlu0 %583
    %v585 = vadd.s32 %v42, 4294967288
    %vm586 = vcmp.ge.s32.totalorder %v585, 0
    %vm587 = vcmp.lt.s32.totalorder %v585, 128
    %vm588 = vmand %vm586, %vm587
    %v589 = vsel %vm588, %v578, 0.0
    %v590 = vsel %vm588, %v580, 0.0
    %v591 = vsel %vm588, %v582, 0.0
    %v592 = vsel %vm588, %v584, 0.0
    %v593 = vadd.f32 %v573, %v589
    %v594 = vadd.f32 %v574, %v590
    %v595 = vadd.f32 %v575, %v591
    %v596 = vadd.f32 %v576, %v592
    %v597 = vrot.slane %v593, 1
    %v598 = vrot.slane %v594, 1
    %v599 = vrot.slane %v595, 1
    %v600 = vrot.slane %v596, 1
    %v601 = vsel %vm304, %v599, %v600
    %v602 = vsel %vm304, %v598, %v599
    %v603 = vsel %vm304, %v597, %v598
    %v604 = vsel %vm304, %v600, %v597
    %v605 = vsel %vm321, %v603, 0.0
    %v606 = vsel %vm322, %v602, 0.0
    %v607 = vsel %vm323, %v601, 0.0
    %v608 = vsel %vm324, %v604, 0.0
    %v609 = vadd.f32 %v593, %v605
    %v610 = vadd.f32 %v594, %v606
    %v611 = vadd.f32 %v595, %v607
    %v612 = vadd.f32 %v596, %v608
    %v613 = vrot.slane %v593, 7
    %v614 = vrot.slane %v594, 7
    %v615 = vrot.slane %v595, 7
    %v616 = vrot.slane %v596, 7
    %v617 = vsel %vm271, %v615, %v616
    %v618 = vsel %vm271, %v614, %v615
    %v619 = vsel %vm271, %v613, %v614
    %v620 = vsel %vm271, %v616, %v613
    %v621 = vsel %vm288, %v620, 0.0
    %v622 = vsel %vm289, %v619, 0.0
    %v623 = vsel %vm290, %v618, 0.0
    %v624 = vsel %vm291, %v617, 0.0
    %v625 = vadd.f32 %v609, %v621
    %v626 = vadd.f32 %v610, %v622
    %v627 = vadd.f32 %v611, %v623
    %v628 = vadd.f32 %v612, %v624
    %v629 = vmul.f32 %v625, 0.11111111
    %v630 = vmul.f32 %v626, 0.11111111
    %v631 = vmul.f32 %v627, 0.11111111
    %v632 = vmul.f32 %v628, 0.11111111
    %s633 = sld [smem:[#allocation2]]
    %v634 = vstv %s633
    %v635 = vmul.f32 %v634, %v33
    %v636 = vmul.f32 %v634, %v34
    %v637 = vmul.f32 %v634, %v35
    %v638 = vmul.f32 %v634, %v36
    %s639 = sld [smem:[#allocation2 + $0x1]]
    %v640 = vstv %s639
    %v641 = vmul.f32 %v640, %v629
    %v642 = vmul.f32 %v640, %v630
    %v643 = vmul.f32 %v640, %v631
    %v644 = vmul.f32 %v640, %v632
    %v645 = vadd.f32 %v635, %v641
    %v646 = vadd.f32 %v636, %v642
    %v647 = vadd.f32 %v637, %v643
    %v648 = vadd.f32 %v638, %v644
    %649 = vst [vmem:[%s5] sm:$0xff] %v645
    %650 = vst [vmem:[%s5 + $0x8] sm:$0xff] %v646
    %651 = vst [vmem:[%s5 + $0x10] sm:$0xff] %v647
    %652 = vst [vmem:[%s5 + $0x18] sm:$0xff] %v648
    // Predicated region
    $region26: #{_forward.1} parent=1 // pred_check
      _
    $region27: #{_forward.1} parent=1 // pred_check_branch
      %654 = sbr.rel (0) target = $region29
    $region28: #{_forward.1} parent=1 // pred_region
      _
    $region29: #{_forward.1} parent=1 // pred_fallthru
      _
    // Predicated region
    $region30: #{_forward.1} parent=1 // pred_check
      _
    $region31: #{_forward.1} parent=1 // pred_check_branch
      %656 = sbr.rel (0) target = $region33
    $region32: #{_forward.1} parent=1 // pred_region
      _
    $region33: #{_forward.1} parent=1 // pred_fallthru
      _
    %657 = vsyncpa [#allocation3], 1

</llo_original>
